<compile_context>
chip_gen: v6e
topology: v6e:2x2x1
jax: 0.10.0
libtpu: 0.0.40
codegen_flags: <defaults>
</compile_context>

<pallas_src>
import functools

import jax
import jax.numpy as jnp
from jax.experimental import pallas as pl
from jax.experimental.pallas import tpu as pltpu


def _sublane_multiple(dtype) -> int:
    # Sublane packing: f32 -> 8 rows, bf16 -> 16, int8/fp8 -> 32.
    return max(8, 32 // jnp.dtype(dtype).itemsize)


def _target_tile_bytes() -> int:
    """Per-buffer tile budget.  Pallas double-buffers in + out => ~4x total."""
    try:
        kind = jax.devices()[0].device_kind.lower()
    except Exception:  # defensive: unknown backends fall back to the safe size
        kind = ""
    if "v6" in kind:
        return 4 * 1024 * 1024   # 128 MiB physical / 32 MiB scoped default
    return 2 * 1024 * 1024       # v5e (16 MiB scoped default), v7x (64 MiB physical)


def _cdiv(a: int, b: int) -> int:
    return -(-a // b)


def _pick_block_rows(rows: int, row_bytes: int, sub: int, tile_bytes: int) -> int:
    """Sublane-aligned rows-per-tile.

    Small inputs (fit in one tile): single block, no forced split.
    Large inputs: tiles near the budget, >= 4 grid steps (preferably an even
    count) so v7x's two TensorCores each get >= 2 pipelined steps; the extra
    ~0.35 us/step is negligible at this size on single-core chips.
    """
    if rows * row_bytes <= tile_bytes:
        return rows  # one block equal to the full dim (legal even below 8)

    cap = max(sub, (tile_bytes // row_bytes) // sub * sub)
    block_rows = cap
    if _cdiv(rows, block_rows) < 4:
        target = max(sub, _cdiv(rows, 4) // sub * sub)
        while _cdiv(rows, target) < 4 and target > sub:
            target -= sub
        block_rows = target
    steps = _cdiv(rows, block_rows)
    if steps % 2:
        alt = max(sub, _cdiv(rows, steps + 1) // sub * sub)
        if _cdiv(rows, alt) % 2 == 0:
            block_rows = alt
    return min(block_rows, rows)


def _choose_layout(batch: int, num_features: int, dtype):
    """Pick a 2-D slab (rows, lanes) plus a sublane-aligned row-tile size."""
    total = batch * num_features
    itemsize = jnp.dtype(dtype).itemsize
    sub = _sublane_multiple(dtype)
    tile_bytes = _target_tile_bytes()

    # Lane-dense path: last dim a large multiple of 128 -> unmasked vst stores.
    # Only block_rows must be sublane-aligned (or equal the full dim); the
    # ragged edge is handled by a pl.cdiv grid, so rows itself is unconstrained.
    for lanes in (1024, 512, 256, 128):
        if total % lanes:
            continue
        rows = total // lanes
        if rows == 0:
            continue
        block_rows = _pick_block_rows(rows, lanes * itemsize, sub, tile_bytes)
        return (rows, lanes), block_rows

    # Fallback (total not divisible by 128): keep (batch, num_features), use
    # the full feature dim as the last block dim (legal below (8,128) when it
    # equals the array dim) and tile the batch with a cdiv grid.
    block_rows = _pick_block_rows(batch, num_features * itemsize, sub, tile_bytes)
    return (batch, num_features), block_rows


def _feature_map_kernel(logits_ref, out_ref, *, transform):
    # Elementwise feature map on the current tile.  Concrete subclass
    # transforms fuse here (single HBM read + write; VALU/EUP work is hidden
    # under the DMA of this bandwidth-bound kernel).
    x = logits_ref[...]
    if transform is None:
        out_ref[...] = x
    else:
        out_ref[...] = transform(x).astype(out_ref.dtype)


def base_feature_map(logits, *, transform=None, force_kernel=False):
    """Base feature map over (batch, num_features) logits.

    Args:
      logits: (batch, num_features) array.
      transform: optional elementwise function fused into the Pallas kernel
        (the hook for concrete BaseFeatureMap subclasses).  None -> identity.
      force_kernel: run the Pallas kernel even for the identity map (testing);
        by default the identity short-circuits (no HBM traffic, no launch).

    Returns:
      (batch, num_features) array, same dtype as `logits`.
    """
    if transform is None and not force_kernel:
        return logits  # phi(logits) = logits: nothing to compute or copy.

    batch, num_features = logits.shape
    (rows, lanes), block_rows = _choose_layout(batch, num_features, logits.dtype)
    reshaped = (rows, lanes) != (batch, num_features)
    # Wrapper-side reshape is pure layout plumbing for an elementwise map.
    x = logits.reshape(rows, lanes) if reshaped else logits

    tile_bytes = _target_tile_bytes()
    out = pl.pallas_call(
        functools.partial(_feature_map_kernel, transform=transform),
        out_shape=jax.ShapeDtypeStruct((rows, lanes), logits.dtype),
        grid=(pl.cdiv(rows, block_rows),),
        in_specs=[pl.BlockSpec((block_rows, lanes), lambda i: (i, 0))],
        out_specs=pl.BlockSpec((block_rows, lanes), lambda i: (i, 0)),
        compiler_params=pltpu.CompilerParams(
            dimension_semantics=("parallel",),
            # in + out, double-buffered => ~4x one tile; leave headroom.
            vmem_limit_bytes=max(4 * tile_bytes + (4 << 20), 32 << 20),
        ),
    )(x)

    return out.reshape(batch, num_features) if reshaped else out


if __name__ == "__main__":
    shapes = [
        (8, 32),      # tiny; total divisible by 256 -> lane-dense single block
        (8, 33),      # tiny; total not divisible by 128 -> fallback single block
        (256, 128),   # lane-dense (32, 1024) single block
        (100, 33),    # fallback, full feature dim as last block dim
        (4096, 256),  # 4 MiB -> lane-dense tiled path (multiple grid steps)
    ]
    for i, (batch, num_features) in enumerate(shapes):
        logits = jax.random.normal(
            jax.random.PRNGKey(i), (batch, num_features), dtype=jnp.float32)
        out = jax.block_until_ready(base_feature_map(logits, force_kernel=True))
        assert out.shape == logits.shape
        assert out.dtype == logits.dtype
        assert bool(jnp.all(out == logits))

    # Identity short-circuit (the default): no kernel launch, no HBM traffic.
    logits = jax.random.normal(jax.random.PRNGKey(0), (8, 32), dtype=jnp.float32)
    out = base_feature_map(logits)
    assert bool(jnp.all(out == logits))

    print("KERNEL_OK")
</pallas_src>

<mosaic_0001>
module attributes {stable_mosaic.version = 11 : i64} {
  func.func @_feature_map_kernel(%arg0: i32, %arg1: memref<1x256xf32, #tpu.memory_space<vmem>>, %arg2: memref<1x256xf32, #tpu.memory_space<vmem>>) attributes {dimension_semantics = [#tpu.dimension_semantics<parallel>], iteration_bounds = array<i64: 1>, scalar_prefetch = 0 : i64, scratch_operands = 0 : i64, tpu.core_type = #tpu.core_type<tc>, window_params = [{transform_indices = @transform_0, window_bounds = array<i64: 1, 256>}, {transform_indices = @transform_1, window_bounds = array<i64: 1, 256>}]} {
    %c0 = arith.constant 0 : index
    %c0_0 = arith.constant 0 : index
    %0 = vector.load %arg1[%c0, %c0_0] : memref<1x256xf32, #tpu.memory_space<vmem>>, vector<1x256xf32>
    %c0_1 = arith.constant 0 : index
    %c0_2 = arith.constant 0 : index
    %1 = vector.load %arg2[%c0_1, %c0_2] : memref<1x256xf32, #tpu.memory_space<vmem>>, vector<1x256xf32>
    tpu.vector_store %arg2[%c0_1, %c0_2], %0 {strides = array<i32>} : memref<1x256xf32, #tpu.memory_space<vmem>>, vector<1x256xf32>,
    return
  }
  func.func @transform_0(%arg0: i32) -> (i32, i32) {
    %c0_i32 = arith.constant 0 : i32
    %c0_i32_0 = arith.constant 0 : i32
    return %arg0, %c0_i32 : i32, i32
  }
  func.func @transform_1(%arg0: i32) -> (i32, i32) {
    %c0_i32 = arith.constant 0 : i32
    %c0_i32_0 = arith.constant 0 : i32
    return %arg0, %c0_i32 : i32, i32
  }
}

</mosaic_0001>

<llo_original>
// kernel: tpu_custom_call.1
$region0: #{tpu_custom_call.1}
  #allocation0 [shape = 'u32[]', space=smem, size = 0x4, offset = 0x4, fixed_abs, tag = 'smem constant byte address 0x4 - core index']
  #allocation1 [shape = 'u32[144,128]{1,0:T(1,128)}', space=vmem, size = 0x12000, scoped, tag = 'internal scratch']
  %s0 = inlined_call_operand.hbm [shape: f32[1,256], index: 0, kind: input, shape index: {}]
  %s1 = inlined_call_operand.hbm [shape: f32[1,256], index: 1, kind: output, shape index: {}]
  %s2 = sld [smem:[#allocation0]]
  $region18: #{tpu_custom_call.1} parent=0
    _
  %s4 = ssub.s32 1, %s2
  %s5 = scalar_select 0, %s4, %s2
  $region1: #{tpu_custom_call.1} parent=0
    #allocation2 [shape = 'u8[1024]{0}', space=vmem, size = 0x400, scoped, tag = 'input window, operand 0, single buffered']
    #allocation3 [shape = 's32[1]{0}', space=sflag, size = 0x4, scoped, tag = 'scoped memory for tpu_custom_call.1']
    #allocation4 [shape = 's32[1]{0}', space=sflag, size = 0x4, scoped, tag = 'scoped memory for tpu_custom_call.1']
    #allocation5 [shape = 'u8[1024]{0}', space=vmem, size = 0x400, scoped, tag = 'output window, operand 0, single buffered']
    %6 = vsyncpa [#allocation3], 0
    %7 = vsyncpa [#allocation4], 0
    // Predicated region
    $region2: #{tpu_custom_call.1} parent=1 // pred_check
      _
    $region3: #{tpu_custom_call.1} parent=1 // pred_check_branch
      %9 = sbr.rel (0) target = $region5
    $region4: #{tpu_custom_call.1} parent=1 // pred_region
      %s11 = ssub.s32 32, 32
      %12 = vsyncadd [#allocation3], %s11
      %s14 = sshll.u32 [#allocation2], 4
      %s15 = int_to_ptr.vmem [resolvable:$true] %s14
      %17 = dma.hbm_to_vmem [thread:$0]  %s0, 32, %s15, [#allocation3]
    $region5: #{tpu_custom_call.1} parent=1 // pred_fallthru
      _
    // Predicated region
    $region6: #{tpu_custom_call.1} parent=1 // pred_check
      _
    $region7: #{tpu_custom_call.1} parent=1 // pred_check_branch
      %19 = sbr.rel (0) target = $region9
    $region8: #{tpu_custom_call.1} parent=1 // pred_region
      %20 = dma.done [#allocation3], 32
    $region9: #{tpu_custom_call.1} parent=1 // pred_fallthru
      _
    %v21 = vld [vmem:[#allocation2] sm:$0x3]
    %v22 = vlaneseq
    %vm23 = vcmp.ge.s32.totalorder %v22, 0
    %vm24 = vcmp.lt.s32.totalorder %v22, 256
    %vm25 = vmand %vm23, %vm24
    %26 = vst.msk [vmem:[#allocation5] sm:$0x3] %vm25, %v21
    // Predicated region
    $region10: #{tpu_custom_call.1} parent=1 // pred_check
      _
    $region11: #{tpu_custom_call.1} parent=1 // pred_check_branch
      %28 = sbr.rel (0) target = $region13
    $region12: #{tpu_custom_call.1} parent=1 // pred_region
      %s30 = ssub.s32 32, 32
      %31 = vsyncadd [#allocation4], %s30
      %s33 = sshll.u32 [#allocation5], 4
      %s34 = int_to_ptr.vmem [resolvable:$true] %s33
      %36 = dma.vmem_to_hbm [thread:$0]  %s34, 32, %s1, [#allocation4]
    $region13: #{tpu_custom_call.1} parent=1 // pred_fallthru
      _
    // Predicated region
    $region14: #{tpu_custom_call.1} parent=1 // pred_check
      _
    $region15: #{tpu_custom_call.1} parent=1 // pred_check_branch
      %38 = sbr.rel (0) target = $region17
    $region16: #{tpu_custom_call.1} parent=1 // pred_region
      %39 = dma.done [#allocation4], 32
    $region17: #{tpu_custom_call.1} parent=1 // pred_fallthru
      _
    %40 = vsyncpa [#allocation3], 1
    %41 = vsyncpa [#allocation4], 1

</llo_original>
